<compile_context>
chip_gen: v5e
topology: v5e:2x2
jax: 0.10.0
libtpu: 0.0.40
codegen_flags: <defaults>
</compile_context>

<pallas_src>
import functools

import jax
import jax.numpy as jnp
from jax.experimental import pallas as pl
from jax.experimental.pallas import tpu as pltpu

# Conservative scoped-VMEM budget that fits v5e (16 MiB default -> raised),
# v6e (128 MiB physical) and v7x (64 MiB physical).
_VMEM_LIMIT = 64 * 1024 * 1024


def _fit_tile(preferred, dim):
    """Largest tile <= preferred that divides dim (falls back to dim)."""
    t = min(preferred, dim)
    while dim % t:
        t //= 2
        if t < 8:
            return dim
    return t


# --------------------------- fused RMSNorm + matmul ---------------------------
# Used for the QKV projection: out = rmsnorm(x) @ W, W = [wq | wk | wv].
# The normalized activation is computed once per row tile (j == 0) into a bf16
# VMEM scratch and reused for every N tile.

def _norm_matmul_kernel(x_ref, g_ref, w_ref, o_ref, xn_ref, *, eps):
    @pl.when(pl.program_id(1) == 0)
    def _():
        x = x_ref[...].astype(jnp.float32)
        var = jnp.mean(x * x, axis=-1, keepdims=True)
        xn_ref[...] = (x * jax.lax.rsqrt(var + eps) *
                       g_ref[...].astype(jnp.float32)).astype(xn_ref.dtype)

    o_ref[...] = jnp.dot(
        xn_ref[...], w_ref[...],
        preferred_element_type=jnp.float32).astype(o_ref.dtype)


def norm_matmul(x, gamma, w, *, eps=1e-6, tm=256, tn=512,
                out_dtype=jnp.bfloat16):
    """x: [S, H], gamma: [1, H], w: [H, N] -> rmsnorm(x) @ w  [S, N]."""
    S, H = x.shape
    _, N = w.shape
    tm = _fit_tile(tm, S)
    tn = _fit_tile(tn, N)
    flops = 2 * S * H * N
    bytes_accessed = 2 * (S * H + (S // tm) * H * N + S * N)
    return pl.pallas_call(
        functools.partial(_norm_matmul_kernel, eps=eps),
        out_shape=jax.ShapeDtypeStruct((S, N), out_dtype),
        grid=(S // tm, N // tn),
        in_specs=[
            pl.BlockSpec((tm, H), lambda i, j: (i, 0)),
            pl.BlockSpec((1, H), lambda i, j: (0, 0)),
            pl.BlockSpec((H, tn), lambda i, j: (0, j)),
        ],
        out_specs=pl.BlockSpec((tm, tn), lambda i, j: (i, j)),
        scratch_shapes=[pltpu.VMEM((tm, H), jnp.bfloat16)],
        compiler_params=pltpu.CompilerParams(
            dimension_semantics=("parallel", "arbitrary"),
            vmem_limit_bytes=_VMEM_LIMIT),
        cost_estimate=pl.CostEstimate(
            flops=int(flops), transcendentals=0,
            bytes_accessed=int(bytes_accessed)),
    )(x, gamma, w)


# --------------------------- matmul + residual add ---------------------------
# O-projection: out = residual + x @ W.

def _matmul_residual_kernel(x_ref, w_ref, r_ref, o_ref):
    acc = jnp.dot(x_ref[...], w_ref[...], preferred_element_type=jnp.float32)
    o_ref[...] = (acc + r_ref[...].astype(jnp.float32)).astype(o_ref.dtype)


def matmul_residual(x, w, residual, *, tm=256, tn=512, out_dtype=jnp.bfloat16):
    """x: [S, K], w: [K, N], residual: [S, N] -> residual + x @ w."""
    S, K = x.shape
    _, N = w.shape
    tm = _fit_tile(tm, S)
    tn = _fit_tile(tn, N)
    flops = 2 * S * K * N
    bytes_accessed = 2 * (S * K + (S // tm) * K * N + 2 * S * N)
    return pl.pallas_call(
        _matmul_residual_kernel,
        out_shape=jax.ShapeDtypeStruct((S, N), out_dtype),
        grid=(S // tm, N // tn),
        in_specs=[
            pl.BlockSpec((tm, K), lambda i, j: (i, 0)),
            pl.BlockSpec((K, tn), lambda i, j: (0, j)),
            pl.BlockSpec((tm, tn), lambda i, j: (i, j)),
        ],
        out_specs=pl.BlockSpec((tm, tn), lambda i, j: (i, j)),
        compiler_params=pltpu.CompilerParams(
            dimension_semantics=("parallel", "parallel"),
            vmem_limit_bytes=_VMEM_LIMIT),
        cost_estimate=pl.CostEstimate(
            flops=int(flops), transcendentals=0,
            bytes_accessed=int(bytes_accessed)),
    )(x, w, residual)


# ------------------------------ RoPE on q and k -------------------------------
# Applied once per layer to the q|k part of the [S, 3H] qkv tensor (the softmax
# scale is folded into q here; RoPE is a rotation, so it commutes with the
# scalar).  Output is a lane-dense [S, 2H] bf16 tensor consumed by attention.

def _rope_kernel(x_ref, c_ref, s_ref, o_ref, *, n_heads, scale):
    h = pl.program_id(0)
    x = x_ref[...].astype(jnp.float32)
    x = x * jnp.where(h < n_heads, scale, 1.0).astype(jnp.float32)
    half = x.shape[-1] // 2
    x1 = x[:, :half]
    x2 = x[:, half:]
    c = c_ref[...]
    s = s_ref[...]
    o_ref[...] = jnp.concatenate(
        [x1 * c - x2 * s, x2 * c + x1 * s], axis=-1).astype(o_ref.dtype)


def rope_qk(qkv, cos_h, sin_h, n_heads, head_dim, scale, *, tm=256,
            out_dtype=jnp.bfloat16):
    """qkv: [S, 3H] (q|k|v), cos_h/sin_h: [S, D/2] -> rotated q|k  [S, 2H]."""
    S = qkv.shape[0]
    D = head_dim
    H = n_heads * D
    assert qkv.shape[1] == 3 * H
    tm = _fit_tile(tm, S)
    return pl.pallas_call(
        functools.partial(_rope_kernel, n_heads=n_heads, scale=scale),
        out_shape=jax.ShapeDtypeStruct((S, 2 * H), out_dtype),
        grid=(2 * n_heads, S // tm),
        in_specs=[
            pl.BlockSpec((tm, D), lambda h, i: (i, h)),
            pl.BlockSpec((tm, D // 2), lambda h, i: (i, 0)),
            pl.BlockSpec((tm, D // 2), lambda h, i: (i, 0)),
        ],
        out_specs=pl.BlockSpec((tm, D), lambda h, i: (i, h)),
        compiler_params=pltpu.CompilerParams(
            dimension_semantics=("parallel", "parallel"),
            vmem_limit_bytes=_VMEM_LIMIT),
    )(qkv, cos_h, sin_h)


# ------------------ flash-style causal attention (MHA prefill) ----------------
# q/k come from the pre-rotated [S, 2H] tensor, v from the [S, 3H] qkv tensor.
# Mask work only on diagonal tiles; k/v DMAs clamped away on skipped tiles.

def _attn_kernel(q_ref, k_ref, v_ref, o_ref, m_ref, l_ref, acc_ref,
                 *, approx_recip):
    qi = pl.program_id(1)
    kv = pl.program_id(2)

    @pl.when(kv == 0)
    def _():
        m_ref[...] = jnp.full_like(m_ref, -jnp.inf)
        l_ref[...] = jnp.zeros_like(l_ref)
        acc_ref[...] = jnp.zeros_like(acc_ref)

    def process(masked):
        # contract over D without transposing k
        s = jax.lax.dot_general(q_ref[...], k_ref[...],
                                (((1,), (1,)), ((), ())),
                                preferred_element_type=jnp.float32)  # [tq, tk]
        if masked:
            tq, tk = s.shape
            r = jax.lax.broadcasted_iota(jnp.int32, (tq, tk), 0)
            c = jax.lax.broadcasted_iota(jnp.int32, (tq, tk), 1)
            s = jnp.where(c <= r, s, -1e30)
        m_prev = m_ref[...]
        m_new = jnp.maximum(m_prev, jnp.max(s, axis=-1, keepdims=True))
        alpha = jnp.exp(m_prev - m_new)
        p = jnp.exp(s - m_new)
        l_ref[...] = alpha * l_ref[...] + jnp.sum(p, axis=-1, keepdims=True)
        acc_ref[...] = alpha * acc_ref[...] + jnp.dot(
            p.astype(v_ref.dtype), v_ref[...],
            preferred_element_type=jnp.float32)
        m_ref[...] = m_new

    @pl.when(kv == qi)          # diagonal tile: causal mask needed
    def _():
        process(True)

    @pl.when(kv < qi)           # interior tile: no mask work
    def _():
        process(False)

    @pl.when(kv == pl.num_programs(2) - 1)
    def _():
        if approx_recip:
            inv_l = pl.reciprocal(l_ref[...], approx=True)
            o_ref[...] = (acc_ref[...] * inv_l).astype(o_ref.dtype)
        else:
            o_ref[...] = (acc_ref[...] / l_ref[...]).astype(o_ref.dtype)


def flash_attention(qk_rot, qkv, n_heads, head_dim, *, tq=256, tk=256,
                    approx_recip=False, out_dtype=jnp.bfloat16):
    """qk_rot: [S, 2H] rotated q|k (scale folded into q), qkv: [S, 3H]."""
    S = qkv.shape[0]
    D = head_dim
    H = n_heads * D
    assert qk_rot.shape == (S, 2 * H)
    assert qkv.shape[1] == 3 * H
    tq = _fit_tile(tq, S)
    tk = _fit_tile(tk, S)
    # Causal tile-skip (kv <= qi) and the diagonal-only mask are exact only
    # for tq == tk.
    tq = tk = min(tq, tk)

    # Clamp k/v indices so fully-masked tiles (kv > qi) repeat the previous
    # block index and Pallas issues no new DMA for them.
    q_spec = pl.BlockSpec((tq, D), lambda h, i, j: (i, h))
    k_spec = pl.BlockSpec((tk, D),
                          lambda h, i, j: (jnp.minimum(j, i), n_heads + h))
    v_spec = pl.BlockSpec((tk, D),
                          lambda h, i, j: (jnp.minimum(j, i), 2 * n_heads + h))

    flops = 2 * n_heads * S * S * D          # QK^T + PV, causal-halved
    bytes_accessed = 2 * (3 * S * H + S * H)
    return pl.pallas_call(
        functools.partial(_attn_kernel, approx_recip=approx_recip),
        out_shape=jax.ShapeDtypeStruct((S, H), out_dtype),
        grid=(n_heads, S // tq, S // tk),
        in_specs=[q_spec, k_spec, v_spec],
        out_specs=pl.BlockSpec((tq, D), lambda h, i, j: (i, h)),
        scratch_shapes=[
            pltpu.VMEM((tq, 1), jnp.float32),   # m
            pltpu.VMEM((tq, 1), jnp.float32),   # l
            pltpu.VMEM((tq, D), jnp.float32),   # acc
        ],
        compiler_params=pltpu.CompilerParams(
            dimension_semantics=("parallel", "parallel", "arbitrary"),
            vmem_limit_bytes=_VMEM_LIMIT),
        cost_estimate=pl.CostEstimate(
            flops=int(flops),
            transcendentals=int(n_heads * S * S // 2),
            bytes_accessed=int(bytes_accessed)),
    )(qk_rot, qk_rot, qkv)


# ----------------- fused RMSNorm + gated-SiLU MLP + residual ------------------
# out = x + (silu(rmsnorm(x) @ Wg) * (rmsnorm(x) @ Wu)) @ Wd
# Gate|up weights are packed per I-tile into a single [H, 2*I] array so each
# step is one weight DMA stream and one MXU matmul; the normalized activation
# is cached in a bf16 scratch; the down-projection accumulates in f32 over the
# I grid axis; the residual add happens in the finalize.

def _mlp_kernel(x_ref, g_ref, wgu_ref, wd_ref, o_ref, xn_ref, acc_ref,
                *, eps, ti):
    j = pl.program_id(1)

    @pl.when(j == 0)
    def _():
        acc_ref[...] = jnp.zeros_like(acc_ref)
        x = x_ref[...].astype(jnp.float32)
        var = jnp.mean(x * x, axis=-1, keepdims=True)
        xn_ref[...] = (x * jax.lax.rsqrt(var + eps) *
                       g_ref[...].astype(jnp.float32)).astype(xn_ref.dtype)

    gu = jnp.dot(xn_ref[...], wgu_ref[...],
                 preferred_element_type=jnp.float32)        # [tm, 2*ti]
    gate = gu[:, :ti]
    up = gu[:, ti:]
    h = (gate * jax.nn.sigmoid(gate)) * up                  # SiLU(g) * u
    acc_ref[...] += jnp.dot(h.astype(wd_ref.dtype), wd_ref[...],
                            preferred_element_type=jnp.float32)

    @pl.when(j == pl.num_programs(1) - 1)
    def _():
        o_ref[...] = (acc_ref[...] +
                      x_ref[...].astype(jnp.float32)).astype(o_ref.dtype)


def fused_mlp(x, gamma, wgu, wd, ti, *, eps=1e-6, tm=256,
              out_dtype=jnp.bfloat16):
    """x: [S, H], gamma: [1, H], wgu: [H, 2I] (ti-tile packed), wd: [I, H]."""
    S, H = x.shape
    I = wd.shape[0]
    assert wgu.shape == (H, 2 * I)
    assert I % ti == 0
    tm = _fit_tile(tm, S)
    flops = 6 * S * H * I
    bytes_accessed = 2 * (S * H + (S // tm) * 3 * H * I + S * H)
    return pl.pallas_call(
        functools.partial(_mlp_kernel, eps=eps, ti=ti),
        out_shape=jax.ShapeDtypeStruct((S, H), out_dtype),
        grid=(S // tm, I // ti),
        in_specs=[
            pl.BlockSpec((tm, H), lambda i, j: (i, 0)),
            pl.BlockSpec((1, H), lambda i, j: (0, 0)),
            pl.BlockSpec((H, 2 * ti), lambda i, j: (0, j)),
            pl.BlockSpec((ti, H), lambda i, j: (j, 0)),
        ],
        out_specs=pl.BlockSpec((tm, H), lambda i, j: (i, 0)),
        scratch_shapes=[pltpu.VMEM((tm, H), jnp.bfloat16),    # cached xn
                        pltpu.VMEM((tm, H), jnp.float32)],    # f32 accumulator
        compiler_params=pltpu.CompilerParams(
            dimension_semantics=("parallel", "arbitrary"),
            vmem_limit_bytes=_VMEM_LIMIT),
        cost_estimate=pl.CostEstimate(
            flops=int(flops), transcendentals=int(S * I),
            bytes_accessed=int(bytes_accessed)),
    )(x, gamma, wgu, wd)


# ------------------------------- final RMSNorm --------------------------------

def _rmsnorm_kernel(x_ref, g_ref, o_ref, *, eps):
    x = x_ref[...].astype(jnp.float32)
    var = jnp.mean(x * x, axis=-1, keepdims=True)
    o_ref[...] = (x * jax.lax.rsqrt(var + eps) *
                  g_ref[...].astype(jnp.float32)).astype(o_ref.dtype)


def rmsnorm(x, gamma, *, eps=1e-6, tm=256, out_dtype=jnp.bfloat16):
    S, H = x.shape
    tm = _fit_tile(tm, S)
    return pl.pallas_call(
        functools.partial(_rmsnorm_kernel, eps=eps),
        out_shape=jax.ShapeDtypeStruct((S, H), out_dtype),
        grid=(S // tm,),
        in_specs=[
            pl.BlockSpec((tm, H), lambda i: (i, 0)),
            pl.BlockSpec((1, H), lambda i: (0, 0)),
        ],
        out_specs=pl.BlockSpec((tm, H), lambda i: (i, 0)),
        compiler_params=pltpu.CompilerParams(
            dimension_semantics=("parallel",),
            vmem_limit_bytes=_VMEM_LIMIT),
    )(x, gamma)


# ------------------------- LM head (compute_logits) ---------------------------
# lm_head weight stored pre-transposed [H, V]; logit_scale in the epilogue.

def _lmhead_kernel(x_ref, w_ref, o_ref, *, logit_scale):
    acc = jnp.dot(x_ref[...], w_ref[...], preferred_element_type=jnp.float32)
    o_ref[...] = (acc * logit_scale).astype(o_ref.dtype)


def lm_head_logits(hidden, lm_head_t, *, logit_scale=1.0, tm=256, tv=512,
                   out_dtype=jnp.float32):
    S, H = hidden.shape
    _, V = lm_head_t.shape
    tm = _fit_tile(tm, S)
    tv = _fit_tile(tv, V)
    flops = 2 * S * H * V
    bytes_accessed = 2 * (S * H + (S // tm) * H * V) + 4 * S * V
    return pl.pallas_call(
        functools.partial(_lmhead_kernel, logit_scale=logit_scale),
        out_shape=jax.ShapeDtypeStruct((S, V), out_dtype),
        grid=(S // tm, V // tv),
        in_specs=[
            pl.BlockSpec((tm, H), lambda i, j: (i, 0)),
            pl.BlockSpec((H, tv), lambda i, j: (0, j)),
        ],
        out_specs=pl.BlockSpec((tm, tv), lambda i, j: (i, j)),
        compiler_params=pltpu.CompilerParams(
            dimension_semantics=("parallel", "parallel"),
            vmem_limit_bytes=_VMEM_LIMIT),
        cost_estimate=pl.CostEstimate(
            flops=int(flops), transcendentals=0,
            bytes_accessed=int(bytes_accessed)),
    )(hidden, lm_head_t)


# ------------------------------ params / forward ------------------------------

def pack_gate_up(wg, wu, ti):
    """Pack gate|up weights per ti-wide I tile: columns [g_j | u_j] adjacent."""
    H, I = wg.shape
    assert I % ti == 0
    g = wg.reshape(H, I // ti, ti)
    u = wu.reshape(H, I // ti, ti)
    return jnp.concatenate([g, u], axis=2).reshape(H, 2 * I)


def init_params(key, vocab, hidden, inter, n_layers, n_heads, *, mlp_ti=256):
    wdt = jnp.bfloat16
    ti = _fit_tile(mlp_ti, inter)
    keys = jax.random.split(key, 3 + n_layers)
    params = {
        "embed": (jax.random.normal(keys[0], (vocab, hidden), jnp.float32)
                  * 0.02).astype(wdt),
        # ParallelLMHead weight, pre-transposed to [H, V] once at init.
        "lm_head_t": (jax.random.normal(keys[1], (hidden, vocab), jnp.float32)
                      * 0.02).astype(wdt),
        "final_norm": jnp.ones((1, hidden), jnp.float32),
        "mlp_ti": ti,
        "layers": [],
    }
    for l in range(n_layers):
        ks = jax.random.split(keys[3 + l], 7)
        wq = jax.random.normal(ks[0], (hidden, hidden), jnp.float32) * 0.02
        wk = jax.random.normal(ks[1], (hidden, hidden), jnp.float32) * 0.02
        wv = jax.random.normal(ks[2], (hidden, hidden), jnp.float32) * 0.02
        wg = jax.random.normal(ks[4], (hidden, inter), jnp.float32) * 0.02
        wu = jax.random.normal(ks[5], (hidden, inter), jnp.float32) * 0.02
        params["layers"].append({
            "ln1": jnp.ones((1, hidden), jnp.float32),
            "ln2": jnp.ones((1, hidden), jnp.float32),
            # fused QKV weight: single [H, 3H] MXU pass
            "wqkv": jnp.concatenate([wq, wk, wv], axis=1).astype(wdt),
            "wo": (jax.random.normal(ks[3], (hidden, hidden), jnp.float32)
                   * 0.02).astype(wdt),
            # gate|up packed per ti tile -> one DMA stream / one matmul
            "wgu": pack_gate_up(wg, wu, ti).astype(wdt),
            "wd": (jax.random.normal(ks[6], (inter, hidden), jnp.float32)
                   * 0.02).astype(wdt),
        })
    return params


def transformers_for_causal_lm_forward(params, input_ids, positions,
                                       n_heads, head_dim, rope_theta=10000.0):
    """Mirrors TransformersForCausalLM.forward -> hidden_states [S, H]."""
    scale = head_dim ** -0.5

    # Half-width RoPE tables, hoisted out of the layer loop.
    inv_freq = 1.0 / (rope_theta ** (jnp.arange(0, head_dim, 2,
                                                dtype=jnp.float32) / head_dim))
    ang = positions.astype(jnp.float32)[:, None] * inv_freq[None, :]  # [S, D/2]
    cos_h = jnp.cos(ang)
    sin_h = jnp.sin(ang)

    # (input_ids[None, ...] / [0, ...] batch handling collapses for batch=1)
    h = jnp.take(params["embed"], input_ids, axis=0)                  # [S, H]

    for lp in params["layers"]:
        # self-attention block:
        #   fused norm+QKV -> RoPE(q,k) once per layer -> flash attn -> O+res
        qkv = norm_matmul(h, lp["ln1"], lp["wqkv"])                   # [S, 3H]
        qk_rot = rope_qk(qkv, cos_h, sin_h, n_heads, head_dim, scale) # [S, 2H]
        attn = flash_attention(qk_rot, qkv, n_heads, head_dim)        # [S, H]
        h = matmul_residual(attn, lp["wo"], h)                        # [S, H]
        # MLP block: fused norm + packed gate/up + SiLU + down + residual
        h = fused_mlp(h, lp["ln2"], lp["wgu"], lp["wd"], params["mlp_ti"])
    return rmsnorm(h, params["final_norm"])            # hidden_states [S, H]


def compute_logits(params, hidden_states, logit_scale=1.0, sample_rows=None):
    """LogitsProcessor(lm_head, hidden_states).

    For prefill serving, pass `sample_rows` (e.g. the last-token indices) so
    the full [S, V] logits are never materialized.
    """
    if sample_rows is not None:
        hidden_states = jnp.take(hidden_states, sample_rows, axis=0)
    return lm_head_logits(hidden_states, params["lm_head_t"],
                          logit_scale=logit_scale)


# ---------------------------------- driver ------------------------------------

if __name__ == "__main__":
    VOCAB, HIDDEN, INTER = 1024, 256, 512
    N_LAYERS, N_HEADS = 2, 2
    HEAD_DIM = HIDDEN // N_HEADS       # 128 -> lane-dense attention tiles
    SEQ = 128

    key = jax.random.PRNGKey(0)
    pkey, ikey = jax.random.split(key)
    params = init_params(pkey, VOCAB, HIDDEN, INTER, N_LAYERS, N_HEADS)

    input_ids = jax.random.randint(ikey, (SEQ,), 0, VOCAB, dtype=jnp.int32)
    positions = jnp.arange(SEQ, dtype=jnp.int32)

    hidden_states = transformers_for_causal_lm_forward(
        params, input_ids, positions, N_HEADS, HEAD_DIM)
    logits = compute_logits(params, hidden_states)

    jax.block_until_ready(hidden_states)
    jax.block_until_ready(logits)

    assert hidden_states.shape == (SEQ, HIDDEN)
    assert logits.shape == (SEQ, VOCAB)
    assert bool(jnp.all(jnp.isfinite(hidden_states.astype(jnp.float32))))
    assert bool(jnp.all(jnp.isfinite(logits)))
    print("KERNEL_OK")
</pallas_src>

<mosaic_0001>
module attributes {stable_mosaic.version = 11 : i64} {
  func.func @_norm_matmul_kernel(%arg0: i32, %arg1: i32, %arg2: memref<128x256xbf16, #tpu.memory_space<vmem>>, %arg3: memref<1x256xf32, #tpu.memory_space<vmem>>, %arg4: memref<256x256xbf16, #tpu.memory_space<vmem>>, %arg5: memref<128x256xbf16, #tpu.memory_space<vmem>>, %arg6: memref<128x256xbf16, #tpu.memory_space<vmem>>) attributes {dimension_semantics = [#tpu.dimension_semantics<parallel>, #tpu.dimension_semantics<arbitrary>], iteration_bounds = array<i64: 1, 3>, scalar_prefetch = 0 : i64, scratch_operands = 1 : i64, tpu.core_type = #tpu.core_type<tc>, window_params = [{transform_indices = @transform_0, window_bounds = array<i64: 128, 256>}, {pipeline_mode = #tpu.pipeline_mode<synchronous>, transform_indices = @transform_1, window_bounds = array<i64: 1, 256>}, {transform_indices = @transform_2, window_bounds = array<i64: 256, 256>}, {transform_indices = @transform_3, window_bounds = array<i64: 128, 256>}]} {
    %c0_i32 = arith.constant 0 : i32
    %0 = arith.cmpi eq, %arg1, %c0_i32 : i32
    %1 = arith.extui %0 : i1 to i32
    %c0_i32_0 = arith.constant 0 : i32
    %2 = arith.cmpi ne, %1, %c0_i32_0 : i32
    scf.if %2 {
      %c0_6 = arith.constant 0 : index
      %c0_7 = arith.constant 0 : index
      %8 = vector.load %arg2[%c0_6, %c0_7] : memref<128x256xbf16, #tpu.memory_space<vmem>>, vector<128x256xbf16>
      %9 = arith.extf %8 : vector<128x256xbf16> to vector<128x256xf32>
      %10 = arith.mulf %9, %9 : vector<128x256xf32>
      %cst_8 = arith.constant dense<0.000000e+00> : vector<128xf32>
      %11 = vector.multi_reduction <add>, %10, %cst_8 [1] : vector<128x256xf32> to vector<128xf32>
      %12 = vector.shape_cast %11 : vector<128xf32> to vector<128x1xf32>
      %cst_9 = arith.constant 2.560000e+02 : f32
      %13 = vector.broadcast %cst_9 : f32 to vector<128x1xf32>
      %14 = arith.divf %12, %13 : vector<128x1xf32>
      %cst_10 = arith.constant 9.99999997E-7 : f32
      %15 = vector.broadcast %cst_10 : f32 to vector<128x1xf32>
      %16 = arith.addf %14, %15 : vector<128x1xf32>
      %17 = math.rsqrt %16 : vector<128x1xf32>
      %18 = vector.broadcast %17 : vector<128x1xf32> to vector<128x256xf32>
      %19 = arith.mulf %9, %18 : vector<128x256xf32>
      %c0_11 = arith.constant 0 : index
      %c0_12 = arith.constant 0 : index
      %20 = vector.load %arg3[%c0_11, %c0_12] : memref<1x256xf32, #tpu.memory_space<vmem>>, vector<1x256xf32>
      %21 = vector.broadcast %20 : vector<1x256xf32> to vector<128x256xf32>
      %22 = arith.mulf %19, %21 : vector<128x256xf32>
      %23 = arith.truncf %22 : vector<128x256xf32> to vector<128x256xbf16>
      %c0_13 = arith.constant 0 : index
      %c0_14 = arith.constant 0 : index
      %24 = vector.load %arg6[%c0_13, %c0_14] : memref<128x256xbf16, #tpu.memory_space<vmem>>, vector<128x256xbf16>
      tpu.vector_store %arg6[%c0_13, %c0_14], %23 {strides = array<i32>} : memref<128x256xbf16, #tpu.memory_space<vmem>>, vector<128x256xbf16>,
    } else {
    }
    %c0 = arith.constant 0 : index
    %c0_1 = arith.constant 0 : index
    %3 = vector.load %arg6[%c0, %c0_1] : memref<128x256xbf16, #tpu.memory_space<vmem>>, vector<128x256xbf16>
    %c0_2 = arith.constant 0 : index
    %c0_3 = arith.constant 0 : index
    %4 = vector.load %arg4[%c0_2, %c0_3] : memref<256x256xbf16, #tpu.memory_space<vmem>>, vector<256x256xbf16>
    %cst = arith.constant dense<0.000000e+00> : vector<128x256xf32>
    %5 = tpu.matmul %3, %4, %cst {dimension_numbers = #tpu.dot_dimension_numbers<[1], [0], [0], [1], [0, 0, 1, 1], [], []>} : vector<128x256xbf16>, vector<256x256xbf16>, vector<128x256xf32> -> vector<128x256xf32>
    %6 = arith.truncf %5 : vector<128x256xf32> to vector<128x256xbf16>
    %c0_4 = arith.constant 0 : index
    %c0_5 = arith.constant 0 : index
    %7 = vector.load %arg5[%c0_4, %c0_5] : memref<128x256xbf16, #tpu.memory_space<vmem>>, vector<128x256xbf16>
    tpu.vector_store %arg5[%c0_4, %c0_5], %6 {strides = array<i32>} : memref<128x256xbf16, #tpu.memory_space<vmem>>, vector<128x256xbf16>,
    return
  }
  func.func @transform_0(%arg0: i32, %arg1: i32) -> (i32, i32) {
    %c0_i32 = arith.constant 0 : i32
    %c0_i32_0 = arith.constant 0 : i32
    return %arg0, %c0_i32 : i32, i32
  }
  func.func @transform_1(%arg0: i32, %arg1: i32) -> (i32, i32) {
    %c0_i32 = arith.constant 0 : i32
    %c0_i32_0 = arith.constant 0 : i32
    %c0_i32_1 = arith.constant 0 : i32
    return %c0_i32, %c0_i32_0 : i32, i32
  }
  func.func @transform_2(%arg0: i32, %arg1: i32) -> (i32, i32) {
    %c0_i32 = arith.constant 0 : i32
    %c0_i32_0 = arith.constant 0 : i32
    return %c0_i32, %arg1 : i32, i32
  }
  func.func @transform_3(%arg0: i32, %arg1: i32) -> (i32, i32) {
    %c0_i32 = arith.constant 0 : i32
    return %arg0, %arg1 : i32, i32
  }
}

</mosaic_0001>

<llo_original>
// kernel: tpu_custom_call.1
$region0: #{tpu_custom_call.1}
  #allocation0 [shape = 'u32[]', space=smem, size = 0x4, offset = 0x4, fixed_abs, tag = 'smem constant byte address 0x4 - core index']
  #allocation1 [shape = 'u32[72,128]{1,0:T(1,128)}', space=vmem, size = 0x9000, scoped, tag = 'internal scratch']
  #allocation2 [shape = 'bf16[128,256]{1,0:T(8,128)(2,1)}', space=vmem, size = 0x10000, scoped, tag = 'scratch operand']
  %s0 = inlined_call_operand.hbm [shape: bf16[128,256], index: 0, kind: input, shape index: {}]
  %s1 = inlined_call_operand.hbm [shape: f32[1,256], index: 1, kind: input, shape index: {}]
  %s2 = inlined_call_operand.hbm [shape: bf16[256,768], index: 2, kind: input, shape index: {}]
  %s3 = inlined_call_operand.hbm [shape: bf16[128,768], index: 3, kind: output, shape index: {}]
  %s4 = sld [smem:[#allocation0]]
  $region61: #{tpu_custom_call.1} parent=0
    _
  %s6 = ssub.s32 1, %s4
  %s7 = scalar_select 0, %s6, %s4
  $region1: #{tpu_custom_call.1} parent=0
    #allocation3 [shape = 'u8[65536]{0}', space=vmem, size = 0x10000, scoped, tag = 'input window, operand 0, single buffered']
    #allocation4 [shape = 's32[2]{0}', space=sflag, size = 0x8, scoped, tag = 'scoped memory for tpu_custom_call.1']
    #allocation5 [shape = 's32[2]{0}', space=sflag, size = 0x8, scoped, tag = 'scoped memory for tpu_custom_call.1']
    #allocation6 [shape = 'u8[1024]{0}', space=vmem, size = 0x400, scoped, tag = 'input window, operand 1, single buffered']
    #allocation7 [shape = 's32[1]{0}', space=sflag, size = 0x4, scoped, tag = 'scoped memory for tpu_custom_call.1']
    #allocation8 [shape = 'u8[262144]{0}', space=vmem, size = 0x40000, scoped, tag = 'input window, operand 2']
    #allocation9 [shape = 'u8[131072]{0}', space=vmem, size = 0x20000, scoped, tag = 'output window, operand 0']
    %8 = vsyncpa [#allocation4], 0
    %9 = vsyncpa [#allocation7], 0
    %10 = vsyncpa [#allocation5], 0
    %s11 = scalar_lea.sflag [#allocation5], 1
    %12 = vsyncpa %s11, 0
    loop: start=0, step=1, limit=5
    $region2: #{tpu_custom_call.1} parent=1 // loop_pre_header
      _
    $region3: #{tpu_custom_call.1} parent=1 // loop_header
      %s14 = sphi 0, %s18
      %p15 = scmp.ge.s32.totalorder %s14, 5
      %s21 = sphi 0, %s33
      %s22 = sphi 0, %s29
      %s23 = sphi 0, %s21
      %s24 = sphi 0, %s22
      %s25 = sphi 0, %s23
      %s26 = sphi 0, %s24
      %s36 = sphi 0, %s38
      %s39 = sphi 0, %s36
      %s40 = sphi 0, %s39
      %s56 = sphi 0, %s40
      %s60 = sphi 0, %s60
      %s62 = sphi 0, %s60
      %s63 = sphi 0, %s62
      %s77 = sphi 0, %s63
      %s83 = sphi 0, %s85
      %s86 = sphi 0, %s83
      %s87 = sphi 0, %s86
      %s103 = sphi 0, %s87
      %s111 = sphi 0, %s113
      %s114 = sphi 0, %s111
      %s115 = sphi 0, %s114
      %s131 = sphi 0, %s115
    $region4: #{tpu_custom_call.1} parent=1 // loop_header_branch
      %17 = sbr.rel (%p15) target = $region8
    $region5: #{tpu_custom_call.1} parent=1 // loop_body
      %s19 = ssub.s32 %s14, 1
      %s20 = ssub.s32 %s14, 2
      %s27 = sadd.s32 1, %s22
      %p28 = scmp.ge.s32.totalorder %s27, 3
      %s29 = scalar_select %p28, 0, %s27
      %s30 = sadd.s32 1, %s21
      %s31 = scalar_select %p28, %s30, %s21
      %p32 = scmp.ge.s32.totalorder %s31, 1
      %s33 = scalar_select %p32, 0, %s31
      %s34 = ssub.s32 %s21, %s33
      %p35 = scmp.eq.s32.totalorder %s34, 0
      %s37 = sadd.s32 %s36, 1
      %s38 = scalar_select %p35, %s36, %s37
      %p41 = pneg %p35
      %p42 = scmp.eq.s32.totalorder %s14, 2
      %p43 = por %p41, %p42
      %p44 = scmp.ne.s32.totalorder %s36, %s39
      %p45 = scmp.eq.s32.totalorder %s14, 0
      %p46 = por %p44, %p45
      %p47 = scmp.ne.s32.totalorder %s36, %s39
      %p48 = scmp.eq.s32.totalorder %s19, 2
      %p49 = por %p47, %p48
      %p50 = scmp.ne.s32.totalorder %s39, %s40
      %p51 = scmp.eq.s32.totalorder %s19, 0
      %p52 = por %p50, %p51
      %p53 = scmp.ne.s32.totalorder %s39, %s40
      %p54 = scmp.eq.s32.totalorder %s20, 2
      %p55 = por %p53, %p54
      %p57 = scmp.ne.s32.totalorder %s40, %s56
      %p58 = scmp.eq.s32.totalorder %s20, 0
      %p59 = por %p57, %p58
      %s61 = sadd.s32 %s60, 1
      %p64 = scmp.eq.s32.totalorder %s14, 2
      %p65 = scmp.ne.s32.totalorder %s60, %s62
      %p66 = scmp.eq.s32.totalorder %s14, 0
      %p67 = por %p65, %p66
      %p68 = scmp.ne.s32.totalorder %s60, %s62
      %p69 = scmp.eq.s32.totalorder %s19, 2
      %p70 = por %p68, %p69
      %p71 = scmp.ne.s32.totalorder %s62, %s63
      %p72 = scmp.eq.s32.totalorder %s19, 0
      %p73 = por %p71, %p72
      %p74 = scmp.ne.s32.totalorder %s62, %s63
      %p75 = scmp.eq.s32.totalorder %s20, 2
      %p76 = por %p74, %p75
      %p78 = scmp.ne.s32.totalorder %s63, %s77
      %p79 = scmp.eq.s32.totalorder %s20, 0
      %p80 = por %p78, %p79
      %s81 = ssub.s32 %s22, %s29
      %p82 = scmp.eq.s32.totalorder %s81, 0
      %s84 = sadd.s32 %s83, 1
      %s85 = scalar_select %p82, %s83, %s84
      %p88 = pneg %p82
      %p89 = scmp.eq.s32.totalorder %s14, 2
      %p90 = por %p88, %p89
      %p91 = scmp.ne.s32.totalorder %s83, %s86
      %p92 = scmp.eq.s32.totalorder %s14, 0
      %p93 = por %p91, %p92
      %p94 = scmp.ne.s32.totalorder %s83, %s86
      %p95 = scmp.eq.s32.totalorder %s19, 2
      %p96 = por %p94, %p95
      %p97 = scmp.ne.s32.totalorder %s86, %s87
      %p98 = scmp.eq.s32.totalorder %s19, 0
      %p99 = por %p97, %p98
      %p100 = scmp.ne.s32.totalorder %s86, %s87
      %p101 = scmp.eq.s32.totalorder %s20, 2
      %p102 = por %p100, %p101
      %p104 = scmp.ne.s32.totalorder %s87, %s103
      %p105 = scmp.eq.s32.totalorder %s20, 0
      %p106 = por %p104, %p105
      %s107 = ssub.s32 %s21, %s33
      %s108 = ssub.s32 %s22, %s29
      %s109 = sor.u32 %s107, %s108
      %p110 = scmp.eq.s32.totalorder %s109, 0
      %s112 = sadd.s32 %s111, 1
      %s113 = scalar_select %p110, %s111, %s112
      %p116 = pneg %p110
      %p117 = scmp.eq.s32.totalorder %s14, 2
      %p118 = por %p116, %p117
      %p119 = scmp.ne.s32.totalorder %s111, %s114
      %p120 = scmp.eq.s32.totalorder %s14, 0
      %p121 = por %p119, %p120
      %p122 = scmp.ne.s32.totalorder %s111, %s114
      %p123 = scmp.eq.s32.totalorder %s19, 2
      %p124 = por %p122, %p123
      %p125 = scmp.ne.s32.totalorder %s114, %s115
      %p126 = scmp.eq.s32.totalorder %s19, 0
      %p127 = por %p125, %p126
      %p128 = scmp.ne.s32.totalorder %s114, %s115
      %p129 = scmp.eq.s32.totalorder %s20, 2
      %p130 = por %p128, %p129
      %p132 = scmp.ne.s32.totalorder %s115, %s131
      %p133 = scmp.eq.s32.totalorder %s20, 0
      %p134 = por %p132, %p133
      %p135 = scmp.le.s32.totalorder 1, %s14
      %p136 = scmp.lt.s32.totalorder %s14, 4
      %p137 = pnand %p135, %p136
      %p138 = pneg %p137
      // Predicated region
      $region9: #{tpu_custom_call.1} parent=5 // pred_check
        _
      $region10: #{tpu_custom_call.1} parent=5 // pred_check_branch
        %140 = sbr.rel (%p137) target = $region12
      $region11: #{tpu_custom_call.1} parent=5 // pred_region
        %s141 = ssub.s32 %s14, 1
        // Predicated region
        $region13: #{tpu_custom_call.1} parent=11 // pred_check
          %p142 = pneg %p52
        $region14: #{tpu_custom_call.1} parent=11 // pred_check_branch
          %144 = sbr.rel (%p142) target = $region16
        $region15: #{tpu_custom_call.1} parent=11 // pred_region
          %s145 = smul.u32 16, %s23
          %147 = vsyncadd [#allocation4], 0
          %s148 = smul.addr %s145, 2
          %s149 = smul.addr %s148, 4
          %s150 = scalar_lea.hbm %s0, %s149
          %s151 = sshll.u32 %s150, 4
          %s152 = int_to_ptr.hbm [resolvable:$true] %s151
          %s153 = sshll.u32 [#allocation3], 4
          %s154 = int_to_ptr.vmem [resolvable:$true] %s153
          %159 = dma.hbm_to_vmem [thread:$0]  %s152, 2048, %s154, [#allocation4], 128, 128, 8
        $region16: #{tpu_custom_call.1} parent=11 // pred_fallthru
          _
        // Predicated region
        $region17: #{tpu_custom_call.1} parent=11 // pred_check
          %p160 = pneg %p73
        $region18: #{tpu_custom_call.1} parent=11 // pred_check_branch
          %162 = sbr.rel (%p160) target = $region20
        $region19: #{tpu_custom_call.1} parent=11 // pred_region
          %164 = vsyncadd [#allocation7], 0
          %s166 = sshll.u32 %s1, 4
          %s167 = int_to_ptr.hbm [resolvable:$true] %s166
          %s168 = sshll.u32 [#allocation6], 4
          %s169 = int_to_ptr.vmem [resolvable:$true] %s168
          %171 = dma.hbm_to_vmem [thread:$0]  %s167, 32, %s169, [#allocation7]
        $region20: #{tpu_custom_call.1} parent=11 // pred_fallthru
          _
      $region12: #{tpu_custom_call.1} parent=5 // pred_fallthru
        _
      %p172 = scmp.lt.s32.totalorder %s14, 3
      // Predicated region
      $region21: #{tpu_custom_call.1} parent=5 // pred_check
        %p173 = pneg %p172
      $region22: #{tpu_custom_call.1} parent=5 // pred_check_branch
        %175 = sbr.rel (%p173) target = $region24
      $region23: #{tpu_custom_call.1} parent=5 // pred_region
        // Predicated region
        $region25: #{tpu_custom_call.1} parent=23 // pred_check
          %p176 = pneg %p93
        $region26: #{tpu_custom_call.1} parent=23 // pred_check_branch
          %178 = sbr.rel (%p176) target = $region28
        $region27: #{tpu_custom_call.1} parent=23 // pred_region
          %s179 = sand.u32 %s14, 1
          %s180 = scalar_lea.sflag [#allocation4], %s179
          %s181 = sand.u32 %s83, 1
          %s182 = smul.addr %s181, 256
          %s183 = scalar_lea.vmem [#allocation8], %s182
          %s184 = smul.u32 2, %s22
          %186 = vsyncadd %s180, 0
          %s187 = smul.addr %s184, 4
          %s188 = scalar_lea.hbm %s2, %s187
          %s189 = sshll.u32 %s188, 4
          %s190 = int_to_ptr.hbm [resolvable:$true] %s189
          %s191 = sshll.u32 %s183, 4
          %s192 = int_to_ptr.vmem [resolvable:$true] %s191
          %197 = dma.hbm_to_vmem [thread:$0]  %s190, 4096, %s192, %s180, 384, 128, 8
        $region28: #{tpu_custom_call.1} parent=23 // pred_fallthru
          _
      $region24: #{tpu_custom_call.1} parent=5 // pred_fallthru
        _
      %p198 = scmp.le.s32.totalorder 1, %s14
      %p199 = scmp.lt.s32.totalorder %s14, 4
      %p200 = pnand %p198, %p199
      %p201 = pneg %p200
      // Predicated region
      $region29: #{tpu_custom_call.1} parent=5 // pred_check
        _
      $region30: #{tpu_custom_call.1} parent=5 // pred_check_branch
        %203 = sbr.rel (%p200) target = $region32
      $region31: #{tpu_custom_call.1} parent=5 // pred_region
        %s204 = ssub.s32 %s14, 1
        // Predicated region
        $region33: #{tpu_custom_call.1} parent=31 // pred_check
          %p205 = pneg %p52
        $region34: #{tpu_custom_call.1} parent=31 // pred_check_branch
          %207 = sbr.rel (%p205) target = $region36
        $region35: #{tpu_custom_call.1} parent=31 // pred_region
          %209 = dma.done [#allocation4], 2048
        $region36: #{tpu_custom_call.1} parent=31 // pred_fallthru
          _
        // Predicated region
        $region37: #{tpu_custom_call.1} parent=31 // pred_check
          %p210 = pneg %p73
        $region38: #{tpu_custom_call.1} parent=31 // pred_check_branch
          %212 = sbr.rel (%p210) target = $region40
        $region39: #{tpu_custom_call.1} parent=31 // pred_region
          %214 = dma.done [#allocation7], 32
        $region40: #{tpu_custom_call.1} parent=31 // pred_fallthru
          _
        %s215 = sand.u32 %s19, 1
        %s216 = scalar_lea.sflag [#allocation4], %s215
        %s217 = sand.u32 %s86, 1
        %s218 = smul.addr %s217, 256
        %s219 = scalar_lea.vmem [#allocation8], %s218
        // Predicated region
        $region41: #{tpu_custom_call.1} parent=31 // pred_check
          %p220 = pneg %p99
        $region42: #{tpu_custom_call.1} parent=31 // pred_check_branch
          %222 = sbr.rel (%p220) target = $region44
        $region43: #{tpu_custom_call.1} parent=31 // pred_region
          %224 = dma.done %s216, 4096
        $region44: #{tpu_custom_call.1} parent=31 // pred_fallthru
          _
        %p225 = pneg %p52
        %p226 = pneg %p49
        %p227 = pneg %p73
        %p228 = pneg %p70
        %s229 = sand.u32 %s19, 1
        %s230 = scalar_lea.sflag [#allocation4], %s229
        %s231 = sand.u32 %s86, 1
        %s232 = smul.addr %s231, 256
        %s233 = scalar_lea.vmem [#allocation8], %s232
        %p234 = pneg %p99
        %p235 = pneg %p96
        %p236 = pneg %p127
        %p237 = pneg %p124
        %s238 = sand.u32 %s114, 1
        %s239 = scalar_lea.sflag [#allocation5], %s238
        %s240 = sand.u32 %s114, 1
        %s241 = smul.addr %s240, 128
        %s242 = scalar_lea.vmem [#allocation9], %s241
        %s243 = smul.u32 16, %s23
        %s244 = smul.u32 2, %s24
        %s245 = smul.u32 16, %s23
        %s246 = smul.u32 2, %s24
        %p247 = scmp.eq.s32.totalorder %s24, 0
        // Predicated region
        $region45: #{tpu_custom_call.1} parent=31 // pred_check
          %p248 = pneg %p247
        $region46: #{tpu_custom_call.1} parent=31 // pred_check_branch
          %250 = sbr.rel (%p248) target = $region48
        $region47: #{tpu_custom_call.1} parent=31 // pred_region
          %v251 = vld [vmem:[#allocation3] sm:$0xff]
          %v252 = vld [vmem:[#allocation3 + $0x8] sm:$0xff]
          %v253 = vld [vmem:[#allocation3 + $0x10] sm:$0xff]
          %v254 = vld [vmem:[#allocation3 + $0x18] sm:$0xff]
          %v255 = vld [vmem:[#allocation3 + $0x20] sm:$0xff]
          %v256 = vld [vmem:[#allocation3 + $0x28] sm:$0xff]
          %v257 = vld [vmem:[#allocation3 + $0x30] sm:$0xff]
          %v258 = vld [vmem:[#allocation3 + $0x38] sm:$0xff]
          %v259 = vld [vmem:[#allocation3 + $0x40] sm:$0xff]
          %v260 = vld [vmem:[#allocation3 + $0x48] sm:$0xff]
          %v261 = vld [vmem:[#allocation3 + $0x50] sm:$0xff]
          %v262 = vld [vmem:[#allocation3 + $0x58] sm:$0xff]
          %v263 = vld [vmem:[#allocation3 + $0x60] sm:$0xff]
          %v264 = vld [vmem:[#allocation3 + $0x68] sm:$0xff]
          %v265 = vld [vmem:[#allocation3 + $0x70] sm:$0xff]
          %v266 = vld [vmem:[#allocation3 + $0x78] sm:$0xff]
          %v267 = vunpack.c.l.bf16 %v251
          %v268 = vunpack.c.h.bf16 %v251
          %v269 = vunpack.c.l.bf16 %v252
          %v270 = vunpack.c.h.bf16 %v252
          %v271 = vunpack.c.l.bf16 %v253
          %v272 = vunpack.c.h.bf16 %v253
          %v273 = vunpack.c.l.bf16 %v254
          %v274 = vunpack.c.h.bf16 %v254
          %v275 = vunpack.c.l.bf16 %v255
          %v276 = vunpack.c.h.bf16 %v255
          %v277 = vunpack.c.l.bf16 %v256
          %v278 = vunpack.c.h.bf16 %v256
          %v279 = vunpack.c.l.bf16 %v257
          %v280 = vunpack.c.h.bf16 %v257
          %v281 = vunpack.c.l.bf16 %v258
          %v282 = vunpack.c.h.bf16 %v258
          %v283 = vunpack.c.l.bf16 %v259
          %v284 = vunpack.c.h.bf16 %v259
          %v285 = vunpack.c.l.bf16 %v260
          %v286 = vunpack.c.h.bf16 %v260
          %v287 = vunpack.c.l.bf16 %v261
          %v288 = vunpack.c.h.bf16 %v261
          %v289 = vunpack.c.l.bf16 %v262
          %v290 = vunpack.c.h.bf16 %v262
          %v291 = vunpack.c.l.bf16 %v263
          %v292 = vunpack.c.h.bf16 %v263
          %v293 = vunpack.c.l.bf16 %v264
          %v294 = vunpack.c.h.bf16 %v264
          %v295 = vunpack.c.l.bf16 %v265
          %v296 = vunpack.c.h.bf16 %v265
          %v297 = vunpack.c.l.bf16 %v266
          %v298 = vunpack.c.h.bf16 %v266
          %v299 = vmul.f32 %v267, %v267
          %v300 = vmul.f32 %v268, %v268
          %v301 = vmul.f32 %v269, %v269
          %v302 = vmul.f32 %v270, %v270
          %v303 = vmul.f32 %v271, %v271
          %v304 = vmul.f32 %v272, %v272
          %v305 = vmul.f32 %v273, %v273
          %v306 = vmul.f32 %v274, %v274
          %v307 = vmul.f32 %v275, %v275
          %v308 = vmul.f32 %v276, %v276
          %v309 = vmul.f32 %v277, %v277
          %v310 = vmul.f32 %v278, %v278
          %v311 = vmul.f32 %v279, %v279
          %v312 = vmul.f32 %v280, %v280
          %v313 = vmul.f32 %v281, %v281
          %v314 = vmul.f32 %v282, %v282
          %v315 = vmul.f32 %v283, %v283
          %v316 = vmul.f32 %v284, %v284
          %v317 = vmul.f32 %v285, %v285
          %v318 = vmul.f32 %v286, %v286
          %v319 = vmul.f32 %v287, %v287
          %v320 = vmul.f32 %v288, %v288
          %v321 = vmul.f32 %v289, %v289
          %v322 = vmul.f32 %v290, %v290
          %v323 = vmul.f32 %v291, %v291
          %v324 = vmul.f32 %v292, %v292
          %v325 = vmul.f32 %v293, %v293
          %v326 = vmul.f32 %v294, %v294
          %v327 = vmul.f32 %v295, %v295
          %v328 = vmul.f32 %v296, %v296
          %v329 = vmul.f32 %v297, %v297
          %v330 = vmul.f32 %v298, %v298
          %v331 = vadd.f32 %v299, %v300
          %332 = vadd.xlane.f32.xlu0 %v331
          %v333 = vpop.xlane.xlu0 %332
          %v334 = vadd.f32 %v301, %v302
          %335 = vadd.xlane.f32.xlu0 %v334
          %v336 = vpop.xlane.xlu0 %335
          %v337 = vadd.f32 %v303, %v304
          %338 = vadd.xlane.f32.xlu0 %v337
          %v339 = vpop.xlane.xlu0 %338
          %v340 = vadd.f32 %v305, %v306
          %341 = vadd.xlane.f32.xlu0 %v340
          %v342 = vpop.xlane.xlu0 %341
          %v343 = vadd.f32 %v307, %v308
          %344 = vadd.xlane.f32.xlu0 %v343
          %v345 = vpop.xlane.xlu0 %344
          %v346 = vadd.f32 %v309, %v310
          %347 = vadd.xlane.f32.xlu0 %v346
          %v348 = vpop.xlane.xlu0 %347
          %v349 = vadd.f32 %v311, %v312
          %350 = vadd.xlane.f32.xlu0 %v349
          %v351 = vpop.xlane.xlu0 %350
          %v352 = vadd.f32 %v313, %v314
          %353 = vadd.xlane.f32.xlu0 %v352
          %v354 = vpop.xlane.xlu0 %353
          %v355 = vadd.f32 %v315, %v316
          %356 = vadd.xlane.f32.xlu0 %v355
          %v357 = vpop.xlane.xlu0 %356
          %v358 = vadd.f32 %v317, %v318
          %359 = vadd.xlane.f32.xlu0 %v358
          %v360 = vpop.xlane.xlu0 %359
          %v361 = vadd.f32 %v319, %v320
          %362 = vadd.xlane.f32.xlu0 %v361
          %v363 = vpop.xlane.xlu0 %362
          %v364 = vadd.f32 %v321, %v322
          %365 = vadd.xlane.f32.xlu0 %v364
          %v366 = vpop.xlane.xlu0 %365
          %v367 = vadd.f32 %v323, %v324
          %368 = vadd.xlane.f32.xlu0 %v367
          %v369 = vpop.xlane.xlu0 %368
          %v370 = vadd.f32 %v325, %v326
          %371 = vadd.xlane.f32.xlu0 %v370
          %v372 = vpop.xlane.xlu0 %371
          %v373 = vadd.f32 %v327, %v328
          %374 = vadd.xlane.f32.xlu0 %v373
          %v375 = vpop.xlane.xlu0 %374
          %v376 = vadd.f32 %v329, %v330
          %377 = vadd.xlane.f32.xlu0 %v376
          %v378 = vpop.xlane.xlu0 %377
          %v379 = vrcp.pop 256.0
          %v380 = vmul.f32 256.0, %v379
          %v381 = vsub.f32 1.0, %v380
          %v382 = vmul.f32 %v379, %v381
          %v383 = vadd.f32 %v379, %v382
          %vm384 = vweird.f32 %v379
          %v385 = vsel %vm384, %v379, %v383
          %v386 = vmul.f32 %v333, %v385
          %v387 = vmul.f32 %v336, %v385
          %v388 = vmul.f32 %v339, %v385
          %v389 = vmul.f32 %v342, %v385
          %v390 = vmul.f32 %v345, %v385
          %v391 = vmul.f32 %v348, %v385
          %v392 = vmul.f32 %v351, %v385
          %v393 = vmul.f32 %v354, %v385
          %v394 = vmul.f32 %v357, %v385
          %v395 = vmul.f32 %v360, %v385
          %v396 = vmul.f32 %v363, %v385
          %v397 = vmul.f32 %v366, %v385
          %v398 = vmul.f32 %v369, %v385
          %v399 = vmul.f32 %v372, %v385
          %v400 = vmul.f32 %v375, %v385
          %v401 = vmul.f32 %v378, %v385
          %v402 = vadd.f32 %v386, 1e-06
          %v403 = vadd.f32 %v387, 1e-06
          %v404 = vadd.f32 %v388, 1e-06
          %v405 = vadd.f32 %v389, 1e-06
          %v406 = vadd.f32 %v390, 1e-06
          %v407 = vadd.f32 %v391, 1e-06
          %v408 = vadd.f32 %v392, 1e-06
          %v409 = vadd.f32 %v393, 1e-06
          %v410 = vadd.f32 %v394, 1e-06
          %v411 = vadd.f32 %v395, 1e-06
          %v412 = vadd.f32 %v396, 1e-06
          %v413 = vadd.f32 %v397, 1e-06
          %v414 = vadd.f32 %v398, 1e-06
          %v415 = vadd.f32 %v399, 1e-06
          %v416 = vadd.f32 %v400, 1e-06
          %v417 = vadd.f32 %v401, 1e-06
          %v418 = vrsqrt.pop %v402
          %v419 = vmul.f32 %v418, %v402
          %v420 = vmul.f32 %v419, %v418
          %v421 = vmul.f32 0.5, %v420
          %v422 = vsub.f32 1.5, %v421
          %v423 = vmul.f32 %v418, %v422
          %vm424 = vweird.f32 %v402
          %vm425 = vweird.f32 %v418
          %vm426 = vmor %vm424, %vm425
          %v427 = vsel %vm426, %v418, %v423
          %v428 = vrsqrt.pop %v403
          %v429 = vmul.f32 %v428, %v403
          %v430 = vmul.f32 %v429, %v428
          %v431 = vmul.f32 0.5, %v430
          %v432 = vsub.f32 1.5, %v431
          %v433 = vmul.f32 %v428, %v432
          %vm434 = vweird.f32 %v403
          %vm435 = vweird.f32 %v428
          %vm436 = vmor %vm434, %vm435
          %v437 = vsel %vm436, %v428, %v433
          %v438 = vrsqrt.pop %v404
          %v439 = vmul.f32 %v438, %v404
          %v440 = vmul.f32 %v439, %v438
          %v441 = vmul.f32 0.5, %v440
          %v442 = vsub.f32 1.5, %v441
          %v443 = vmul.f32 %v438, %v442
          %vm444 = vweird.f32 %v404
          %vm445 = vweird.f32 %v438
          %vm446 = vmor %vm444, %vm445
          %v447 = vsel %vm446, %v438, %v443
          %v448 = vrsqrt.pop %v405
          %v449 = vmul.f32 %v448, %v405
          %v450 = vmul.f32 %v449, %v448
          %v451 = vmul.f32 0.5, %v450
          %v452 = vsub.f32 1.5, %v451
          %v453 = vmul.f32 %v448, %v452
          %vm454 = vweird.f32 %v405
          %vm455 = vweird.f32 %v448
          %vm456 = vmor %vm454, %vm455
          %v457 = vsel %vm456, %v448, %v453
          %v458 = vrsqrt.pop %v406
          %v459 = vmul.f32 %v458, %v406
          %v460 = vmul.f32 %v459, %v458
          %v461 = vmul.f32 0.5, %v460
          %v462 = vsub.f32 1.5, %v461
          %v463 = vmul.f32 %v458, %v462
          %vm464 = vweird.f32 %v406
          %vm465 = vweird.f32 %v458
          %vm466 = vmor %vm464, %vm465
          %v467 = vsel %vm466, %v458, %v463
          %v468 = vrsqrt.pop %v407
          %v469 = vmul.f32 %v468, %v407
          %v470 = vmul.f32 %v469, %v468
          %v471 = vmul.f32 0.5, %v470
          %v472 = vsub.f32 1.5, %v471
          %v473 = vmul.f32 %v468, %v472
          %vm474 = vweird.f32 %v407
          %vm475 = vweird.f32 %v468
          %vm476 = vmor %vm474, %vm475
          %v477 = vsel %vm476, %v468, %v473
          %v478 = vrsqrt.pop %v408
          %v479 = vmul.f32 %v478, %v408
          %v480 = vmul.f32 %v479, %v478
          %v481 = vmul.f32 0.5, %v480
          %v482 = vsub.f32 1.5, %v481
          %v483 = vmul.f32 %v478, %v482
          %vm484 = vweird.f32 %v408
          %vm485 = vweird.f32 %v478
          %vm486 = vmor %vm484, %vm485
          %v487 = vsel %vm486, %v478, %v483
          %v488 = vrsqrt.pop %v409
          %v489 = vmul.f32 %v488, %v409
          %v490 = vmul.f32 %v489, %v488
          %v491 = vmul.f32 0.5, %v490
          %v492 = vsub.f32 1.5, %v491
          %v493 = vmul.f32 %v488, %v492
          %vm494 = vweird.f32 %v409
          %vm495 = vweird.f32 %v488
          %vm496 = vmor %vm494, %vm495
          %v497 = vsel %vm496, %v488, %v493
          %v498 = vrsqrt.pop %v410
          %v499 = vmul.f32 %v498, %v410
          %v500 = vmul.f32 %v499, %v498
          %v501 = vmul.f32 0.5, %v500
          %v502 = vsub.f32 1.5, %v501
          %v503 = vmul.f32 %v498, %v502
          %vm504 = vweird.f32 %v410
          %vm505 = vweird.f32 %v498
          %vm506 = vmor %vm504, %vm505
          %v507 = vsel %vm506, %v498, %v503
          %v508 = vrsqrt.pop %v411
          %v509 = vmul.f32 %v508, %v411
          %v510 = vmul.f32 %v509, %v508
          %v511 = vmul.f32 0.5, %v510
          %v512 = vsub.f32 1.5, %v511
          %v513 = vmul.f32 %v508, %v512
          %vm514 = vweird.f32 %v411
          %vm515 = vweird.f32 %v508
          %vm516 = vmor %vm514, %vm515
          %v517 = vsel %vm516, %v508, %v513
          %v518 = vrsqrt.pop %v412
          %v519 = vmul.f32 %v518, %v412
          %v520 = vmul.f32 %v519, %v518
          %v521 = vmul.f32 0.5, %v520
          %v522 = vsub.f32 1.5, %v521
          %v523 = vmul.f32 %v518, %v522
          %vm524 = vweird.f32 %v412
          %vm525 = vweird.f32 %v518
          %vm526 = vmor %vm524, %vm525
          %v527 = vsel %vm526, %v518, %v523
          %v528 = vrsqrt.pop %v413
          %v529 = vmul.f32 %v528, %v413
          %v530 = vmul.f32 %v529, %v528
          %v531 = vmul.f32 0.5, %v530
          %v532 = vsub.f32 1.5, %v531
          %v533 = vmul.f32 %v528, %v532
          %vm534 = vweird.f32 %v413
          %vm535 = vweird.f32 %v528
          %vm536 = vmor %vm534, %vm535
          %v537 = vsel %vm536, %v528, %v533
          %v538 = vrsqrt.pop %v414
          %v539 = vmul.f32 %v538, %v414
          %v540 = vmul.f32 %v539, %v538
          %v541 = vmul.f32 0.5, %v540
          %v542 = vsub.f32 1.5, %v541
          %v543 = vmul.f32 %v538, %v542
          %vm544 = vweird.f32 %v414
          %vm545 = vweird.f32 %v538
          %vm546 = vmor %vm544, %vm545
          %v547 = vsel %vm546, %v538, %v543
          %v548 = vrsqrt.pop %v415
          %v549 = vmul.f32 %v548, %v415
          %v550 = vmul.f32 %v549, %v548
          %v551 = vmul.f32 0.5, %v550
          %v552 = vsub.f32 1.5, %v551
          %v553 = vmul.f32 %v548, %v552
          %vm554 = vweird.f32 %v415
          %vm555 = vweird.f32 %v548
          %vm556 = vmor %vm554, %vm555
          %v557 = vsel %vm556, %v548, %v553
          %v558 = vrsqrt.pop %v416
          %v559 = vmul.f32 %v558, %v416
          %v560 = vmul.f32 %v559, %v558
          %v561 = vmul.f32 0.5, %v560
          %v562 = vsub.f32 1.5, %v561
          %v563 = vmul.f32 %v558, %v562
          %vm564 = vweird.f32 %v416
          %vm565 = vweird.f32 %v558
          %vm566 = vmor %vm564, %vm565
          %v567 = vsel %vm566, %v558, %v563
          %v568 = vrsqrt.pop %v417
          %v569 = vmul.f32 %v568, %v417
          %v570 = vmul.f32 %v569, %v568
          %v571 = vmul.f32 0.5, %v570
          %v572 = vsub.f32 1.5, %v571
          %v573 = vmul.f32 %v568, %v572
          %vm574 = vweird.f32 %v417
          %vm575 = vweird.f32 %v568
          %vm576 = vmor %vm574, %vm575
          %v577 = vsel %vm576, %v568, %v573
          %v578 = vmul.f32 %v267, %v427
          %v579 = vmul.f32 %v268, %v427
          %v580 = vmul.f32 %v269, %v437
          %v581 = vmul.f32 %v270, %v437
          %v582 = vmul.f32 %v271, %v447
          %v583 = vmul.f32 %v272, %v447
          %v584 = vmul.f32 %v273, %v457
          %v585 = vmul.f32 %v274, %v457
          %v586 = vmul.f32 %v275, %v467
          %v587 = vmul.f32 %v276, %v467
          %v588 = vmul.f32 %v277, %v477
          %v589 = vmul.f32 %v278, %v477
          %v590 = vmul.f32 %v279, %v487
          %v591 = vmul.f32 %v280, %v487
          %v592 = vmul.f32 %v281, %v497
          %v593 = vmul.f32 %v282, %v497
          %v594 = vmul.f32 %v283, %v507
          %v595 = vmul.f32 %v284, %v507
          %v596 = vmul.f32 %v285, %v517
          %v597 = vmul.f32 %v286, %v517
          %v598 = vmul.f32 %v287, %v527
          %v599 = vmul.f32 %v288, %v527
          %v600 = vmul.f32 %v289, %v537
          %v601 = vmul.f32 %v290, %v537
          %v602 = vmul.f32 %v291, %v547
          %v603 = vmul.f32 %v292, %v547
          %v604 = vmul.f32 %v293, %v557
          %v605 = vmul.f32 %v294, %v557
          %v606 = vmul.f32 %v295, %v567
          %v607 = vmul.f32 %v296, %v567
          %v608 = vmul.f32 %v297, %v577
          %v609 = vmul.f32 %v298, %v577
          %v610 = vld [vmem:[#allocation6] sm:$0x3]
          %v612 = vperm.slane %v610, 0
          %v613 = vperm.slane %v610, 1
          %v616 = vmul.f32 %v578, %v612
          %v617 = vmul.f32 %v579, %v613
          %v618 = vmul.f32 %v580, %v612
          %v619 = vmul.f32 %v581, %v613
          %v620 = vmul.f32 %v582, %v612
          %v621 = vmul.f32 %v583, %v613
          %v622 = vmul.f32 %v584, %v612
          %v623 = vmul.f32 %v585, %v613
          %v624 = vmul.f32 %v586, %v612
          %v625 = vmul.f32 %v587, %v613
          %v626 = vmul.f32 %v588, %v612
          %v627 = vmul.f32 %v589, %v613
          %v628 = vmul.f32 %v590, %v612
          %v629 = vmul.f32 %v591, %v613
          %v630 = vmul.f32 %v592, %v612
          %v631 = vmul.f32 %v593, %v613
          %v632 = vmul.f32 %v594, %v612
          %v633 = vmul.f32 %v595, %v613
          %v634 = vmul.f32 %v596, %v612
          %v635 = vmul.f32 %v597, %v613
          %v636 = vmul.f32 %v598, %v612
          %v637 = vmul.f32 %v599, %v613
          %v638 = vmul.f32 %v600, %v612
          %v639 = vmul.f32 %v601, %v613
          %v640 = vmul.f32 %v602, %v612
          %v641 = vmul.f32 %v603, %v613
          %v642 = vmul.f32 %v604, %v612
          %v643 = vmul.f32 %v605, %v613
          %v644 = vmul.f32 %v606, %v612
          %v645 = vmul.f32 %v607, %v613
          %v646 = vmul.f32 %v608, %v612
          %v647 = vmul.f32 %v609, %v613
          %v648 = vpack.c.bf16 %v617, %v616
          %v649 = vpack.c.bf16 %v619, %v618
          %v650 = vpack.c.bf16 %v621, %v620
          %v651 = vpack.c.bf16 %v623, %v622
          %v652 = vpack.c.bf16 %v625, %v624
          %v653 = vpack.c.bf16 %v627, %v626
          %v654 = vpack.c.bf16 %v629, %v628
          %v655 = vpack.c.bf16 %v631, %v630
          %v656 = vpack.c.bf16 %v633, %v632
          %v657 = vpack.c.bf16 %v635, %v634
          %v658 = vpack.c.bf16 %v637, %v636
          %v659 = vpack.c.bf16 %v639, %v638
          %v660 = vpack.c.bf16 %v641, %v640
          %v661 = vpack.c.bf16 %v643, %v642
          %v662 = vpack.c.bf16 %v645, %v644
          %v663 = vpack.c.bf16 %v647, %v646
          %664 = vst [vmem:[#allocation2] sm:$0xff] %v648
          %665 = vst [vmem:[#allocation2 + $0x8] sm:$0xff] %v649
          %666 = vst [vmem:[#allocation2 + $0x10] sm:$0xff] %v650
          %667 = vst [vmem:[#allocation2 + $0x18] sm:$0xff] %v651
          %668 = vst [vmem:[#allocation2 + $0x20] sm:$0xff] %v652
          %669 = vst [vmem:[#allocation2 + $0x28] sm:$0xff] %v653
          %670 = vst [vmem:[#allocation2 + $0x30] sm:$0xff] %v654
          %671 = vst [vmem:[#allocation2 + $0x38] sm:$0xff] %v655
          %672 = vst [vmem:[#allocation2 + $0x40] sm:$0xff] %v656
          %673 = vst [vmem:[#allocation2 + $0x48] sm:$0xff] %v657
          %674 = vst [vmem:[#allocation2 + $0x50] sm:$0xff] %v658
          %675 = vst [vmem:[#allocation2 + $0x58] sm:$0xff] %v659
          %676 = vst [vmem:[#allocation2 + $0x60] sm:$0xff] %v660
          %677 = vst [vmem:[#allocation2 + $0x68] sm:$0xff] %v661
          %678 = vst [vmem:[#allocation2 + $0x70] sm:$0xff] %v662
          %679 = vst [vmem:[#allocation2 + $0x78] sm:$0xff] %v663
        $region48: #{tpu_custom_call.1} parent=31 // pred_fallthru
          _
        %v680 = vld [vmem:[#allocation2] sm:$0xff]
        %v681 = vld [vmem:[#allocation2 + $0x8] sm:$0xff]
        %v682 = vld [vmem:[#allocation2 + $0x10] sm:$0xff]
        %v683 = vld [vmem:[#allocation2 + $0x18] sm:$0xff]
        %v684 = vld [vmem:[#allocation2 + $0x20] sm:$0xff]
        %v685 = vld [vmem:[#allocation2 + $0x28] sm:$0xff]
        %v686 = vld [vmem:[#allocation2 + $0x30] sm:$0xff]
        %v687 = vld [vmem:[#allocation2 + $0x38] sm:$0xff]
        %v688 = vld [vmem:[#allocation2 + $0x40] sm:$0xff]
        %v689 = vld [vmem:[#allocation2 + $0x48] sm:$0xff]
        %v690 = vld [vmem:[#allocation2 + $0x50] sm:$0xff]
        %v691 = vld [vmem:[#allocation2 + $0x58] sm:$0xff]
        %v692 = vld [vmem:[#allocation2 + $0x60] sm:$0xff]
        %v693 = vld [vmem:[#allocation2 + $0x68] sm:$0xff]
        %v694 = vld [vmem:[#allocation2 + $0x70] sm:$0xff]
        %v695 = vld [vmem:[#allocation2 + $0x78] sm:$0xff]
        %v696 = vld [vmem:[%s219] sm:$0xff]
        %v697 = vld [vmem:[%s219 + $0x8] sm:$0xff]
        %v698 = vld [vmem:[%s219 + $0x10] sm:$0xff]
        %v699 = vld [vmem:[%s219 + $0x18] sm:$0xff]
        %v700 = vld [vmem:[%s219 + $0x20] sm:$0xff]
        %v701 = vld [vmem:[%s219 + $0x28] sm:$0xff]
        %v702 = vld [vmem:[%s219 + $0x30] sm:$0xff]
        %v703 = vld [vmem:[%s219 + $0x38] sm:$0xff]
        %v704 = vld [vmem:[%s219 + $0x40] sm:$0xff]
        %v705 = vld [vmem:[%s219 + $0x48] sm:$0xff]
        %v706 = vld [vmem:[%s219 + $0x50] sm:$0xff]
        %v707 = vld [vmem:[%s219 + $0x58] sm:$0xff]
        %v708 = vld [vmem:[%s219 + $0x60] sm:$0xff]
        %v709 = vld [vmem:[%s219 + $0x68] sm:$0xff]
        %v710 = vld [vmem:[%s219 + $0x70] sm:$0xff]
        %v711 = vld [vmem:[%s219 + $0x78] sm:$0xff]
        %v712 = vld [vmem:[%s219 + $0x80] sm:$0xff]
        %v713 = vld [vmem:[%s219 + $0x88] sm:$0xff]
        %v714 = vld [vmem:[%s219 + $0x90] sm:$0xff]
        %v715 = vld [vmem:[%s219 + $0x98] sm:$0xff]
        %v716 = vld [vmem:[%s219 + $0xa0] sm:$0xff]
        %v717 = vld [vmem:[%s219 + $0xa8] sm:$0xff]
        %v718 = vld [vmem:[%s219 + $0xb0] sm:$0xff]
        %v719 = vld [vmem:[%s219 + $0xb8] sm:$0xff]
        %v720 = vld [vmem:[%s219 + $0xc0] sm:$0xff]
        %v721 = vld [vmem:[%s219 + $0xc8] sm:$0xff]
        %v722 = vld [vmem:[%s219 + $0xd0] sm:$0xff]
        %v723 = vld [vmem:[%s219 + $0xd8] sm:$0xff]
        %v724 = vld [vmem:[%s219 + $0xe0] sm:$0xff]
        %v725 = vld [vmem:[%s219 + $0xe8] sm:$0xff]
        %v726 = vld [vmem:[%s219 + $0xf0] sm:$0xff]
        %v727 = vld [vmem:[%s219 + $0xf8] sm:$0xff]
        %v744 = vunpack.c.l.b16 %v680
        %v745 = vunpack.c.h.b16 %v680
        %v746 = vunpack.c.l.b16 %v681
        %v747 = vunpack.c.h.b16 %v681
        %v748 = vunpack.c.l.b16 %v682
        %v749 = vunpack.c.h.b16 %v682
        %v750 = vunpack.c.l.b16 %v683
        %v751 = vunpack.c.h.b16 %v683
        %v752 = vunpack.c.l.b16 %v684
        %v753 = vunpack.c.h.b16 %v684
        %v754 = vunpack.c.l.b16 %v685
        %v755 = vunpack.c.h.b16 %v685
        %v756 = vunpack.c.l.b16 %v686
        %v757 = vunpack.c.h.b16 %v686
        %v758 = vunpack.c.l.b16 %v687
        %v759 = vunpack.c.h.b16 %v687
        %v760 = vunpack.c.l.b16 %v688
        %v761 = vunpack.c.h.b16 %v688
        %v762 = vunpack.c.l.b16 %v689
        %v763 = vunpack.c.h.b16 %v689
        %v764 = vunpack.c.l.b16 %v690
        %v765 = vunpack.c.h.b16 %v690
        %v766 = vunpack.c.l.b16 %v691
        %v767 = vunpack.c.h.b16 %v691
        %v768 = vunpack.c.l.b16 %v692
        %v769 = vunpack.c.h.b16 %v692
        %v770 = vunpack.c.l.b16 %v693
        %v771 = vunpack.c.h.b16 %v693
        %v772 = vunpack.c.l.b16 %v694
        %v773 = vunpack.c.h.b16 %v694
        %v774 = vunpack.c.l.b16 %v695
        %v775 = vunpack.c.h.b16 %v695
        %v776 = vpack.c.b16 %v746, %v744
        %v777 = vpack.c.b16 %v747, %v745
        %v778 = vpack.c.b16 %v750, %v748
        %v779 = vpack.c.b16 %v751, %v749
        %v780 = vpack.c.b16 %v754, %v752
        %v781 = vpack.c.b16 %v755, %v753
        %v782 = vpack.c.b16 %v758, %v756
        %v783 = vpack.c.b16 %v759, %v757
        %v784 = vpack.c.b16 %v762, %v760
        %v785 = vpack.c.b16 %v763, %v761
        %v786 = vpack.c.b16 %v766, %v764
        %v787 = vpack.c.b16 %v767, %v765
        %v788 = vpack.c.b16 %v770, %v768
        %v789 = vpack.c.b16 %v771, %v769
        %v790 = vpack.c.b16 %v774, %v772
        %v791 = vpack.c.b16 %v775, %v773
        %v840 = vunpack.c.l.b16 %v696
        %v841 = vunpack.c.h.b16 %v696
        %v842 = vunpack.c.l.b16 %v697
        %v843 = vunpack.c.h.b16 %v697
        %v844 = vunpack.c.l.b16 %v698
        %v845 = vunpack.c.h.b16 %v698
        %v846 = vunpack.c.l.b16 %v699
        %v847 = vunpack.c.h.b16 %v699
        %v848 = vunpack.c.l.b16 %v700
        %v849 = vunpack.c.h.b16 %v700
        %v850 = vunpack.c.l.b16 %v701
        %v851 = vunpack.c.h.b16 %v701
        %v852 = vunpack.c.l.b16 %v702
        %v853 = vunpack.c.h.b16 %v702
        %v854 = vunpack.c.l.b16 %v703
        %v855 = vunpack.c.h.b16 %v703
        %v856 = vunpack.c.l.b16 %v704
        %v857 = vunpack.c.h.b16 %v704
        %v858 = vunpack.c.l.b16 %v705
        %v859 = vunpack.c.h.b16 %v705
        %v860 = vunpack.c.l.b16 %v706
        %v861 = vunpack.c.h.b16 %v706
        %v862 = vunpack.c.l.b16 %v707
        %v863 = vunpack.c.h.b16 %v707
        %v864 = vunpack.c.l.b16 %v708
        %v865 = vunpack.c.h.b16 %v708
        %v866 = vunpack.c.l.b16 %v709
        %v867 = vunpack.c.h.b16 %v709
        %v868 = vunpack.c.l.b16 %v710
        %v869 = vunpack.c.h.b16 %v710
        %v870 = vunpack.c.l.b16 %v711
        %v871 = vunpack.c.h.b16 %v711
        %v872 = vunpack.c.l.b16 %v712
        %v873 = vunpack.c.h.b16 %v712
        %v874 = vunpack.c.l.b16 %v713
        %v875 = vunpack.c.h.b16 %v713
        %v876 = vunpack.c.l.b16 %v714
        %v877 = vunpack.c.h.b16 %v714
        %v878 = vunpack.c.l.b16 %v715
        %v879 = vunpack.c.h.b16 %v715
        %v880 = vunpack.c.l.b16 %v716
        %v881 = vunpack.c.h.b16 %v716
        %v882 = vunpack.c.l.b16 %v717
        %v883 = vunpack.c.h.b16 %v717
        %v884 = vunpack.c.l.b16 %v718
        %v885 = vunpack.c.h.b16 %v718
        %v886 = vunpack.c.l.b16 %v719
        %v887 = vunpack.c.h.b16 %v719
        %v888 = vunpack.c.l.b16 %v720
        %v889 = vunpack.c.h.b16 %v720
        %v890 = vunpack.c.l.b16 %v721
        %v891 = vunpack.c.h.b16 %v721
        %v892 = vunpack.c.l.b16 %v722
        %v893 = vunpack.c.h.b16 %v722
        %v894 = vunpack.c.l.b16 %v723
        %v895 = vunpack.c.h.b16 %v723
        %v896 = vunpack.c.l.b16 %v724
        %v897 = vunpack.c.h.b16 %v724
        %v898 = vunpack.c.l.b16 %v725
        %v899 = vunpack.c.h.b16 %v725
        %v900 = vunpack.c.l.b16 %v726
        %v901 = vunpack.c.h.b16 %v726
        %v902 = vunpack.c.l.b16 %v727
        %v903 = vunpack.c.h.b16 %v727
        %v904 = vpack.c.b16 %v842, %v840
        %v905 = vpack.c.b16 %v843, %v841
        %v906 = vpack.c.b16 %v846, %v844
        %v907 = vpack.c.b16 %v847, %v845
        %v908 = vpack.c.b16 %v850, %v848
        %v909 = vpack.c.b16 %v851, %v849
        %v910 = vpack.c.b16 %v854, %v852
        %v911 = vpack.c.b16 %v855, %v853
        %v912 = vpack.c.b16 %v858, %v856
        %v913 = vpack.c.b16 %v859, %v857
        %v914 = vpack.c.b16 %v862, %v860
        %v915 = vpack.c.b16 %v863, %v861
        %v916 = vpack.c.b16 %v866, %v864
        %v917 = vpack.c.b16 %v867, %v865
        %v918 = vpack.c.b16 %v870, %v868
        %v919 = vpack.c.b16 %v871, %v869
        %v920 = vpack.c.b16 %v874, %v872
        %v921 = vpack.c.b16 %v875, %v873
        %v922 = vpack.c.b16 %v878, %v876
        %v923 = vpack.c.b16 %v879, %v877
        %v924 = vpack.c.b16 %v882, %v880
        %v925 = vpack.c.b16 %v883, %v881
        %v926 = vpack.c.b16 %v886, %v884
        %v927 = vpack.c.b16 %v887, %v885
        %v928 = vpack.c.b16 %v890, %v888
        %v929 = vpack.c.b16 %v891, %v889
        %v930 = vpack.c.b16 %v894, %v892
        %v931 = vpack.c.b16 %v895, %v893
        %v932 = vpack.c.b16 %v898, %v896
        %v933 = vpack.c.b16 %v899, %v897
        %v934 = vpack.c.b16 %v902, %v900
        %v935 = vpack.c.b16 %v903, %v901
        %968 = vmatpush.bf16.msra.mxu0 %v918
        %969 = vmatpush.bf16.msra.mxu0 %v916
        %970 = vmatpush.bf16.msra.mxu0 %v914
        %971 = vmatpush.bf16.msra.mxu0 %v912
        %972 = vmatpush.bf16.msra.mxu0 %v910
        %973 = vmatpush.bf16.msra.mxu0 %v908
        %974 = vmatpush.bf16.msra.mxu0 %v906
        %975 = vmatpush.bf16.msra.mxu0 %v904
        %976 = vmatmul.bf16.gmra.mxu0 %v776
        %v977 = vpop.f32.mrf.mxu0
        %v978 = vadd.f32 0.0, %v977
        %v979 = vpop.f32.mrf.mxu0
        %v980 = vadd.f32 0.0, %v979
        %981 = vmatmul.bf16.gmra.mxu0 %v778
        %v982 = vpop.f32.mrf.mxu0
        %v983 = vadd.f32 0.0, %v982
        %v984 = vpop.f32.mrf.mxu0
        %v985 = vadd.f32 0.0, %v984
        %986 = vmatmul.bf16.gmra.mxu0 %v780
        %v987 = vpop.f32.mrf.mxu0
        %v988 = vadd.f32 0.0, %v987
        %v989 = vpop.f32.mrf.mxu0
        %v990 = vadd.f32 0.0, %v989
        %991 = vmatmul.bf16.gmra.mxu0 %v782
        %v992 = vpop.f32.mrf.mxu0
        %v993 = vadd.f32 0.0, %v992
        %v994 = vpop.f32.mrf.mxu0
        %v995 = vadd.f32 0.0, %v994
        %996 = vmatmul.bf16.gmra.mxu0 %v784
        %v997 = vpop.f32.mrf.mxu0
        %v998 = vadd.f32 0.0, %v997
        %v999 = vpop.f32.mrf.mxu0
        %v1000 = vadd.f32 0.0, %v999
        %1001 = vmatmul.bf16.gmra.mxu0 %v786
        %v1002 = vpop.f32.mrf.mxu0
        %v1003 = vadd.f32 0.0, %v1002
        %v1004 = vpop.f32.mrf.mxu0
        %v1005 = vadd.f32 0.0, %v1004
        %1006 = vmatmul.bf16.gmra.mxu0 %v788
        %v1007 = vpop.f32.mrf.mxu0
        %v1008 = vadd.f32 0.0, %v1007
        %v1009 = vpop.f32.mrf.mxu0
        %v1010 = vadd.f32 0.0, %v1009
        %1011 = vmatmul.bf16.gmra.mxu0 %v790
        %v1012 = vpop.f32.mrf.mxu0
        %v1013 = vadd.f32 0.0, %v1012
        %v1014 = vpop.f32.mrf.mxu0
        %v1015 = vadd.f32 0.0, %v1014
        %1016 = vdwg.mxu0
        %1017 = vmatpush.bf16.msra.mxu0 %v934
        %1018 = vmatpush.bf16.msra.mxu0 %v932
        %1019 = vmatpush.bf16.msra.mxu0 %v930
        %1020 = vmatpush.bf16.msra.mxu0 %v928
        %1021 = vmatpush.bf16.msra.mxu0 %v926
        %1022 = vmatpush.bf16.msra.mxu0 %v924
        %1023 = vmatpush.bf16.msra.mxu0 %v922
        %1024 = vmatpush.bf16.msra.mxu0 %v920
        %1025 = vmatmul.bf16.gmra.mxu0 %v777
        %v1026 = vpop.f32.mrf.mxu0
        %v1027 = vadd.f32 %v978, %v1026
        %v1028 = vpop.f32.mrf.mxu0
        %v1029 = vadd.f32 %v980, %v1028
        %1030 = vmatmul.bf16.gmra.mxu0 %v779
        %v1031 = vpop.f32.mrf.mxu0
        %v1032 = vadd.f32 %v983, %v1031
        %v1033 = vpop.f32.mrf.mxu0
        %v1034 = vadd.f32 %v985, %v1033
        %1035 = vmatmul.bf16.gmra.mxu0 %v781
        %v1036 = vpop.f32.mrf.mxu0
        %v1037 = vadd.f32 %v988, %v1036
        %v1038 = vpop.f32.mrf.mxu0
        %v1039 = vadd.f32 %v990, %v1038
        %1040 = vmatmul.bf16.gmra.mxu0 %v783
        %v1041 = vpop.f32.mrf.mxu0
        %v1042 = vadd.f32 %v993, %v1041
        %v1043 = vpop.f32.mrf.mxu0
        %v1044 = vadd.f32 %v995, %v1043
        %1045 = vmatmul.bf16.gmra.mxu0 %v785
        %v1046 = vpop.f32.mrf.mxu0
        %v1047 = vadd.f32 %v998, %v1046
        %v1048 = vpop.f32.mrf.mxu0
        %v1049 = vadd.f32 %v1000, %v1048
        %1050 = vmatmul.bf16.gmra.mxu0 %v787
        %v1051 = vpop.f32.mrf.mxu0
        %v1052 = vadd.f32 %v1003, %v1051
        %v1053 = vpop.f32.mrf.mxu0
        %v1054 = vadd.f32 %v1005, %v1053
        %1055 = vmatmul.bf16.gmra.mxu0 %v789
        %v1056 = vpop.f32.mrf.mxu0
        %v1057 = vadd.f32 %v1008, %v1056
        %v1058 = vpop.f32.mrf.mxu0
        %v1059 = vadd.f32 %v1010, %v1058
        %1060 = vmatmul.bf16.gmra.mxu0 %v791
        %v1061 = vpop.f32.mrf.mxu0
        %v1062 = vadd.f32 %v1013, %v1061
        %v1063 = vpop.f32.mrf.mxu0
        %v1064 = vadd.f32 %v1015, %v1063
        %1065 = vdwg.mxu0
        %1066 = vmatpush.bf16.msra.mxu0 %v919
        %1067 = vmatpush.bf16.msra.mxu0 %v917
        %1068 = vmatpush.bf16.msra.mxu0 %v915
        %1069 = vmatpush.bf16.msra.mxu0 %v913
        %1070 = vmatpush.bf16.msra.mxu0 %v911
        %1071 = vmatpush.bf16.msra.mxu0 %v909
        %1072 = vmatpush.bf16.msra.mxu0 %v907
        %1073 = vmatpush.bf16.msra.mxu0 %v905
        %1074 = vmatmul.bf16.gmra.mxu0 %v776
        %v1075 = vpop.f32.mrf.mxu0
        %v1076 = vadd.f32 0.0, %v1075
        %v1077 = vpop.f32.mrf.mxu0
        %v1078 = vadd.f32 0.0, %v1077
        %1079 = vmatmul.bf16.gmra.mxu0 %v778
        %v1080 = vpop.f32.mrf.mxu0
        %v1081 = vadd.f32 0.0, %v1080
        %v1082 = vpop.f32.mrf.mxu0
        %v1083 = vadd.f32 0.0, %v1082
        %1084 = vmatmul.bf16.gmra.mxu0 %v780
        %v1085 = vpop.f32.mrf.mxu0
        %v1086 = vadd.f32 0.0, %v1085
        %v1087 = vpop.f32.mrf.mxu0
        %v1088 = vadd.f32 0.0, %v1087
        %1089 = vmatmul.bf16.gmra.mxu0 %v782
        %v1090 = vpop.f32.mrf.mxu0
        %v1091 = vadd.f32 0.0, %v1090
        %v1092 = vpop.f32.mrf.mxu0
        %v1093 = vadd.f32 0.0, %v1092
        %1094 = vmatmul.bf16.gmra.mxu0 %v784
        %v1095 = vpop.f32.mrf.mxu0
        %v1096 = vadd.f32 0.0, %v1095
        %v1097 = vpop.f32.mrf.mxu0
        %v1098 = vadd.f32 0.0, %v1097
        %1099 = vmatmul.bf16.gmra.mxu0 %v786
        %v1100 = vpop.f32.mrf.mxu0
        %v1101 = vadd.f32 0.0, %v1100
        %v1102 = vpop.f32.mrf.mxu0
        %v1103 = vadd.f32 0.0, %v1102
        %1104 = vmatmul.bf16.gmra.mxu0 %v788
        %v1105 = vpop.f32.mrf.mxu0
        %v1106 = vadd.f32 0.0, %v1105
        %v1107 = vpop.f32.mrf.mxu0
        %v1108 = vadd.f32 0.0, %v1107
        %1109 = vmatmul.bf16.gmra.mxu0 %v790
        %v1110 = vpop.f32.mrf.mxu0
        %v1111 = vadd.f32 0.0, %v1110
        %v1112 = vpop.f32.mrf.mxu0
        %v1113 = vadd.f32 0.0, %v1112
        %1114 = vdwg.mxu0
        %1115 = vmatpush.bf16.msra.mxu0 %v935
        %1116 = vmatpush.bf16.msra.mxu0 %v933
        %1117 = vmatpush.bf16.msra.mxu0 %v931
        %1118 = vmatpush.bf16.msra.mxu0 %v929
        %1119 = vmatpush.bf16.msra.mxu0 %v927
        %1120 = vmatpush.bf16.msra.mxu0 %v925
        %1121 = vmatpush.bf16.msra.mxu0 %v923
        %1122 = vmatpush.bf16.msra.mxu0 %v921
        %1123 = vmatmul.bf16.gmra.mxu0 %v777
        %v1124 = vpop.f32.mrf.mxu0
        %v1125 = vadd.f32 %v1076, %v1124
        %v1126 = vpop.f32.mrf.mxu0
        %v1127 = vadd.f32 %v1078, %v1126
        %1128 = vmatmul.bf16.gmra.mxu0 %v779
        %v1129 = vpop.f32.mrf.mxu0
        %v1130 = vadd.f32 %v1081, %v1129
        %v1131 = vpop.f32.mrf.mxu0
        %v1132 = vadd.f32 %v1083, %v1131
        %1133 = vmatmul.bf16.gmra.mxu0 %v781
        %v1134 = vpop.f32.mrf.mxu0
        %v1135 = vadd.f32 %v1086, %v1134
        %v1136 = vpop.f32.mrf.mxu0
        %v1137 = vadd.f32 %v1088, %v1136
        %1138 = vmatmul.bf16.gmra.mxu0 %v783
        %v1139 = vpop.f32.mrf.mxu0
        %v1140 = vadd.f32 %v1091, %v1139
        %v1141 = vpop.f32.mrf.mxu0
        %v1142 = vadd.f32 %v1093, %v1141
        %1143 = vmatmul.bf16.gmra.mxu0 %v785
        %v1144 = vpop.f32.mrf.mxu0
        %v1145 = vadd.f32 %v1096, %v1144
        %v1146 = vpop.f32.mrf.mxu0
        %v1147 = vadd.f32 %v1098, %v1146
        %1148 = vmatmul.bf16.gmra.mxu0 %v787
        %v1149 = vpop.f32.mrf.mxu0
        %v1150 = vadd.f32 %v1101, %v1149
        %v1151 = vpop.f32.mrf.mxu0
        %v1152 = vadd.f32 %v1103, %v1151
        %1153 = vmatmul.bf16.gmra.mxu0 %v789
        %v1154 = vpop.f32.mrf.mxu0
        %v1155 = vadd.f32 %v1106, %v1154
        %v1156 = vpop.f32.mrf.mxu0
        %v1157 = vadd.f32 %v1108, %v1156
        %1158 = vmatmul.bf16.gmra.mxu0 %v791
        %v1159 = vpop.f32.mrf.mxu0
        %v1160 = vadd.f32 %v1111, %v1159
        %v1161 = vpop.f32.mrf.mxu0
        %v1162 = vadd.f32 %v1113, %v1161
        %1163 = vdwg.mxu0
        %v1164 = vpack.c.bf16 %v1125, %v1027
        %v1165 = vpack.c.bf16 %v1127, %v1029
        %v1166 = vpack.c.bf16 %v1130, %v1032
        %v1167 = vpack.c.bf16 %v1132, %v1034
        %v1168 = vpack.c.bf16 %v1135, %v1037
        %v1169 = vpack.c.bf16 %v1137, %v1039
        %v1170 = vpack.c.bf16 %v1140, %v1042
        %v1171 = vpack.c.bf16 %v1142, %v1044
        %v1172 = vpack.c.bf16 %v1145, %v1047
        %v1173 = vpack.c.bf16 %v1147, %v1049
        %v1174 = vpack.c.bf16 %v1150, %v1052
        %v1175 = vpack.c.bf16 %v1152, %v1054
        %v1176 = vpack.c.bf16 %v1155, %v1057
        %v1177 = vpack.c.bf16 %v1157, %v1059
        %v1178 = vpack.c.bf16 %v1160, %v1062
        %v1179 = vpack.c.bf16 %v1162, %v1064
        %1180 = vst [vmem:[%s242] sm:$0xff] %v1164
        %1181 = vst [vmem:[%s242 + $0x8] sm:$0xff] %v1165
        %1182 = vst [vmem:[%s242 + $0x10] sm:$0xff] %v1166
        %1183 = vst [vmem:[%s242 + $0x18] sm:$0xff] %v1167
        %1184 = vst [vmem:[%s242 + $0x20] sm:$0xff] %v1168
        %1185 = vst [vmem:[%s242 + $0x28] sm:$0xff] %v1169
        %1186 = vst [vmem:[%s242 + $0x30] sm:$0xff] %v1170
        %1187 = vst [vmem:[%s242 + $0x38] sm:$0xff] %v1171
        %1188 = vst [vmem:[%s242 + $0x40] sm:$0xff] %v1172
        %1189 = vst [vmem:[%s242 + $0x48] sm:$0xff] %v1173
        %1190 = vst [vmem:[%s242 + $0x50] sm:$0xff] %v1174
        %1191 = vst [vmem:[%s242 + $0x58] sm:$0xff] %v1175
        %1192 = vst [vmem:[%s242 + $0x60] sm:$0xff] %v1176
        %1193 = vst [vmem:[%s242 + $0x68] sm:$0xff] %v1177
        %1194 = vst [vmem:[%s242 + $0x70] sm:$0xff] %v1178
        %1195 = vst [vmem:[%s242 + $0x78] sm:$0xff] %v1179
        %s1196 = sand.u32 %s114, 1
        %s1197 = scalar_lea.sflag [#allocation5], %s1196
        %s1198 = sand.u32 %s114, 1
        %s1199 = smul.addr %s1198, 128
        %s1200 = scalar_lea.vmem [#allocation9], %s1199
        // Predicated region
        $region49: #{tpu_custom_call.1} parent=31 // pred_check
          %p1201 = pneg %p124
        $region50: #{tpu_custom_call.1} parent=31 // pred_check_branch
          %1203 = sbr.rel (%p1201) target = $region52
        $region51: #{tpu_custom_call.1} parent=31 // pred_region
          %s1204 = smul.u32 16, %s23
          %s1205 = smul.u32 2, %s24
          %1207 = vsyncadd %s1197, 0
          %s1208 = smul.addr %s1204, 6
          %s1209 = sadd.s32 %s1205, %s1208
          %s1210 = smul.addr %s1209, 4
          %s1211 = scalar_lea.hbm %s3, %s1210
          %s1212 = sshll.u32 %s1200, 4
          %s1213 = int_to_ptr.vmem [resolvable:$true] %s1212
          %s1214 = sshll.u32 %s1211, 4
          %s1215 = int_to_ptr.hbm [resolvable:$true] %s1214
          %1220 = dma.vmem_to_hbm [thread:$0]  %s1213, 2048, %s1215, %s1197, 128, 384, 8
        $region52: #{tpu_custom_call.1} parent=31 // pred_fallthru
          _
      $region32: #{tpu_custom_call.1} parent=5 // pred_fallthru
        _
      %p1221 = scmp.le.s32.totalorder 2, %s14
      // Predicated region
      $region53: #{tpu_custom_call.1} parent=5 // pred_check
        %p1222 = pneg %p1221
      $region54: #{tpu_custom_call.1} parent=5 // pred_check_branch
        %1224 = sbr.rel (%p1222) target = $region56
      $region55: #{tpu_custom_call.1} parent=5 // pred_region
        %s1225 = ssub.s32 %s14, 2
        // Predicated region
        $region57: #{tpu_custom_call.1} parent=55 // pred_check
          %p1226 = pneg %p130
        $region58: #{tpu_custom_call.1} parent=55 // pred_check_branch
          %1228 = sbr.rel (%p1226) target = $region60
        $region59: #{tpu_custom_call.1} parent=55 // pred_region
          %s1229 = sand.u32 %s115, 1
          %s1230 = scalar_lea.sflag [#allocation5], %s1229
          %s1231 = sand.u32 %s115, 1
          %s1232 = smul.addr %s1231, 128
          %s1233 = scalar_lea.vmem [#allocation9], %s1232
          %1235 = dma.done %s1230, 2048
        $region60: #{tpu_custom_call.1} parent=55 // pred_fallthru
          _
      $region56: #{tpu_custom_call.1} parent=5 // pred_fallthru
        _
    $region6: #{tpu_custom_call.1} parent=1 // loop_footer
      %s18 = sadd.s32 1, %s14
    $region7: #{tpu_custom_call.1} parent=1 // loop_footer_branch
      %13 = sbr.rel target = $region3
    $region8: #{tpu_custom_call.1} parent=1 // loop_exit
      _
    %1236 = vsyncpa [#allocation4], 1
    %s1237 = scalar_lea.sflag [#allocation4], 1
    %1238 = vsyncpa %s1237, 1
    %1239 = vsyncpa [#allocation7], 1
    %1240 = vsyncpa [#allocation5], 1
    %s1241 = scalar_lea.sflag [#allocation5], 1
    %1242 = vsyncpa %s1241, 1

</llo_original>
